<compile_context>
chip_gen: v5e
topology: v5e:2x2
jax: 0.10.0
libtpu: 0.0.40
codegen_flags: <defaults>
</compile_context>

<pallas_src>
import functools

import jax
import jax.numpy as jnp
from jax.experimental import pallas as pl
from jax.experimental.pallas import tpu as pltpu


def _linear_kernel(x_ref, w_ref, b_ref, o_ref, *, compute_dtype):
    """One grid step == one (tM, C_in) row-tile of the flattened input.

    x_ref : (tM, C_in) VMEM
    w_ref : (C_in, N)  VMEM  (same block every grid step -> stays resident)
    b_ref : (1, N)     VMEM  (f32)
    o_ref : (tM, N)    VMEM
    """
    x = x_ref[...].astype(compute_dtype)
    acc = jnp.dot(x, w_ref[...], preferred_element_type=jnp.float32)
    o_ref[...] = (acc + b_ref[...]).astype(o_ref.dtype)


def ctc_classifier_forward(x, weight, bias, *, block_m=2048,
                           compute_dtype=jnp.float32):
    """Pallas equivalent of CTC_classifier_MDA.forward.

    x      : (B, T, C_in)        float32 (bf16 also works)
    weight : (num_classes, C_in) (PyTorch nn.Linear layout)
    bias   : (num_classes,)
    returns: (B, T, num_classes)

    block_m: row tile. 2048 is safe on all generations (v5e 16 MiB scoped
    VMEM); on v6e use 2048-4096, on v7x 4096-8192 provided the grid keeps
    >= ~8 steps so both TensorCores get work.
    """
    B, T, C_in = x.shape
    N, C_in_w = weight.shape
    assert C_in == C_in_w, (C_in, C_in_w)
    assert C_in % 128 == 0, "hidden dim must be lane-aligned (module uses 256)"

    M = B * T
    # Free reshape for contiguous row-major x (standard JAX arrays under jit).
    x2 = x.reshape(M, C_in)

    # Weight to (C_in, N) once in the wrapper; bias kept in f32 for the add.
    w = jnp.transpose(weight, (1, 0)).astype(compute_dtype)
    b = bias.astype(jnp.float32).reshape(1, N)

    # Row tile: multiple of 8, capped at block_m, no bigger than needed.
    # No row padding: Pallas handles the ragged last block (grid = cdiv).
    tM = min(block_m, ((M + 7) // 8) * 8)
    grid_m = pl.cdiv(M, tM)

    itemsize = jnp.dtype(x.dtype).itemsize
    cost = pl.CostEstimate(
        flops=2 * M * C_in * N,
        transcendentals=0,
        bytes_accessed=(M * C_in * itemsize                       # x read
                        + C_in * N * jnp.dtype(compute_dtype).itemsize  # w
                        + N * 4                                    # bias
                        + M * N * itemsize),                       # out write
    )

    kernel = functools.partial(_linear_kernel, compute_dtype=compute_dtype)

    out = pl.pallas_call(
        kernel,
        out_shape=jax.ShapeDtypeStruct((M, N), x.dtype),
        grid_spec=pltpu.PrefetchScalarGridSpec(
            num_scalar_prefetch=0,
            grid=(grid_m,),
            in_specs=[
                pl.BlockSpec((tM, C_in), lambda i: (i, 0)),
                pl.BlockSpec((C_in, N), lambda i: (0, 0)),   # full dims: legal
                pl.BlockSpec((1, N), lambda i: (0, 0)),
            ],
            # Last dim == full array dim (N), so no 128-lane padding needed.
            out_specs=pl.BlockSpec((tM, N), lambda i: (i, 0)),
        ),
        compiler_params=pltpu.CompilerParams(
            dimension_semantics=("parallel",),
        ),
        cost_estimate=cost,
    )(x2, w, b)

    return out.reshape(B, T, N)


def _reference(x, weight, bias):
    """Pure-JAX f32 reference (== reshape -> Linear -> reshape)."""
    B, T, C = x.shape
    y = x.reshape(-1, C) @ weight.T + bias
    return y.reshape(B, T, -1)


if __name__ == "__main__":
    key = jax.random.PRNGKey(0)
    k_x, k_w, k_b = jax.random.split(key, 3)

    # Small shapes consistent with the module: batch=2, seq=16, hidden=256
    # (fixed by the module), num_classes=32.
    B, T, C_in, num_classes = 2, 16, 256, 32

    x = jax.random.normal(k_x, (B, T, C_in), dtype=jnp.float32)

    # PyTorch nn.Linear default init: U(-1/sqrt(fan_in), 1/sqrt(fan_in)).
    limit = 1.0 / (C_in ** 0.5)
    weight = jax.random.uniform(k_w, (num_classes, C_in), jnp.float32, -limit, limit)
    bias = jax.random.uniform(k_b, (num_classes,), jnp.float32, -limit, limit)

    out = ctc_classifier_forward(x, weight, bias)
    out = jax.block_until_ready(out)

    ref = _reference(x, weight, bias)
    assert out.shape == ref.shape, (out.shape, ref.shape)
    # f32 MXU path; tolerance allows for TPU default matmul precision.
    assert jnp.allclose(out, ref, atol=2e-2, rtol=2e-2), "mismatch vs reference"

    print("KERNEL_OK")
</pallas_src>

<mosaic_0001>
module attributes {stable_mosaic.version = 11 : i64} {
  func.func @_linear_kernel(%arg0: i32, %arg1: memref<32x256xf32, #tpu.memory_space<vmem>>, %arg2: memref<256x32xf32, #tpu.memory_space<vmem>>, %arg3: memref<1x32xf32, #tpu.memory_space<vmem>>, %arg4: memref<32x32xf32, #tpu.memory_space<vmem>>) attributes {dimension_semantics = [#tpu.dimension_semantics<parallel>], iteration_bounds = array<i64: 1>, scalar_prefetch = 0 : i64, scratch_operands = 0 : i64, tpu.core_type = #tpu.core_type<tc>, window_params = [{transform_indices = @transform_0, window_bounds = array<i64: 32, 256>}, {pipeline_mode = #tpu.pipeline_mode<synchronous>, transform_indices = @transform_1, window_bounds = array<i64: 256, 32>}, {pipeline_mode = #tpu.pipeline_mode<synchronous>, transform_indices = @transform_2, window_bounds = array<i64: 1, 32>}, {transform_indices = @transform_3, window_bounds = array<i64: 32, 32>}]} {
    %c0 = arith.constant 0 : index
    %c0_0 = arith.constant 0 : index
    %0 = vector.load %arg1[%c0, %c0_0] : memref<32x256xf32, #tpu.memory_space<vmem>>, vector<32x256xf32>
    %c0_1 = arith.constant 0 : index
    %c0_2 = arith.constant 0 : index
    %1 = vector.load %arg2[%c0_1, %c0_2] : memref<256x32xf32, #tpu.memory_space<vmem>>, vector<256x32xf32>
    %cst = arith.constant dense<0.000000e+00> : vector<32x32xf32>
    %2 = tpu.matmul %0, %1, %cst {dimension_numbers = #tpu.dot_dimension_numbers<[1], [0], [0], [1], [0, 0, 1, 1], [], []>} : vector<32x256xf32>, vector<256x32xf32>, vector<32x32xf32> -> vector<32x32xf32>
    %c0_3 = arith.constant 0 : index
    %c0_4 = arith.constant 0 : index
    %3 = vector.load %arg3[%c0_3, %c0_4] : memref<1x32xf32, #tpu.memory_space<vmem>>, vector<1x32xf32>
    %4 = vector.broadcast %3 : vector<1x32xf32> to vector<32x32xf32>
    %5 = arith.addf %2, %4 : vector<32x32xf32>
    %c0_5 = arith.constant 0 : index
    %c0_6 = arith.constant 0 : index
    %6 = vector.load %arg4[%c0_5, %c0_6] : memref<32x32xf32, #tpu.memory_space<vmem>>, vector<32x32xf32>
    tpu.vector_store %arg4[%c0_5, %c0_6], %5 {strides = array<i32>} : memref<32x32xf32, #tpu.memory_space<vmem>>, vector<32x32xf32>,
    return
  }
  func.func @transform_0(%arg0: i32) -> (i32, i32) {
    %c0_i32 = arith.constant 0 : i32
    %c0_i32_0 = arith.constant 0 : i32
    return %arg0, %c0_i32 : i32, i32
  }
  func.func @transform_1(%arg0: i32) -> (i32, i32) {
    %c0_i32 = arith.constant 0 : i32
    %c0_i32_0 = arith.constant 0 : i32
    %c0_i32_1 = arith.constant 0 : i32
    return %c0_i32, %c0_i32_0 : i32, i32
  }
  func.func @transform_2(%arg0: i32) -> (i32, i32) {
    %c0_i32 = arith.constant 0 : i32
    %c0_i32_0 = arith.constant 0 : i32
    %c0_i32_1 = arith.constant 0 : i32
    return %c0_i32, %c0_i32_0 : i32, i32
  }
  func.func @transform_3(%arg0: i32) -> (i32, i32) {
    %c0_i32 = arith.constant 0 : i32
    %c0_i32_0 = arith.constant 0 : i32
    return %arg0, %c0_i32 : i32, i32
  }
}

</mosaic_0001>

<llo_original>
// kernel: tpu_custom_call.1
$region0: #{tpu_custom_call.1}
  #allocation0 [shape = 'u32[]', space=smem, size = 0x4, offset = 0x4, fixed_abs, tag = 'smem constant byte address 0x4 - core index']
  #allocation1 [shape = 'u32[72,128]{1,0:T(1,128)}', space=vmem, size = 0x9000, scoped, tag = 'internal scratch']
  %s0 = inlined_call_operand.vmem [shape: f32[32,256], index: 0, kind: input, shape index: {}]
  %s1 = inlined_call_operand.vmem [shape: f32[256,32], index: 1, kind: input, shape index: {}]
  %s2 = inlined_call_operand.vmem [shape: f32[1,32], index: 2, kind: input, shape index: {}]
  %s3 = inlined_call_operand.hbm [shape: f32[32,32], index: 3, kind: output, shape index: {}]
  %s4 = sld [smem:[#allocation0]]
  $region22: #{tpu_custom_call.1} parent=0
    _
  %s6 = ssub.s32 1, %s4
  %s7 = scalar_select 0, %s6, %s4
  $region1: #{tpu_custom_call.1} parent=0
    #allocation2 [shape = 'u8[16384]{0}', space=vmem, size = 0x4000, scoped, tag = 'output window, operand 0, single buffered']
    #allocation3 [shape = 's32[1]{0}', space=sflag, size = 0x4, scoped, tag = 'scoped memory for tpu_custom_call.1']
    %8 = vsyncpa [#allocation3], 0
    // Predicated region
    $region2: #{tpu_custom_call.1} parent=1 // pred_check
      _
    $region3: #{tpu_custom_call.1} parent=1 // pred_check_branch
      %10 = sbr.rel (0) target = $region5
    $region4: #{tpu_custom_call.1} parent=1 // pred_region
      _
    $region5: #{tpu_custom_call.1} parent=1 // pred_fallthru
      _
    // Predicated region
    $region6: #{tpu_custom_call.1} parent=1 // pred_check
      _
    $region7: #{tpu_custom_call.1} parent=1 // pred_check_branch
      %12 = sbr.rel (0) target = $region9
    $region8: #{tpu_custom_call.1} parent=1 // pred_region
      _
    $region9: #{tpu_custom_call.1} parent=1 // pred_fallthru
      _
    // Predicated region
    $region10: #{tpu_custom_call.1} parent=1 // pred_check
      _
    $region11: #{tpu_custom_call.1} parent=1 // pred_check_branch
      %14 = sbr.rel (0) target = $region13
    $region12: #{tpu_custom_call.1} parent=1 // pred_region
      _
    $region13: #{tpu_custom_call.1} parent=1 // pred_fallthru
      _
    %v15 = vld [vmem:[%s0] sm:$0xff]
    %v16 = vld [vmem:[%s0 + $0x8] sm:$0xff]
    %v17 = vld [vmem:[%s0 + $0x10] sm:$0xff]
    %v18 = vld [vmem:[%s0 + $0x18] sm:$0xff]
    %v19 = vld [vmem:[%s0 + $0x20] sm:$0xff]
    %v20 = vld [vmem:[%s0 + $0x28] sm:$0xff]
    %v21 = vld [vmem:[%s0 + $0x30] sm:$0xff]
    %v22 = vld [vmem:[%s0 + $0x38] sm:$0xff]
    %v23 = vld [vmem:[%s1] sm:$0xff]
    %v24 = vld [vmem:[%s1 + $0x8] sm:$0xff]
    %v25 = vld [vmem:[%s1 + $0x10] sm:$0xff]
    %v26 = vld [vmem:[%s1 + $0x18] sm:$0xff]
    %v27 = vld [vmem:[%s1 + $0x20] sm:$0xff]
    %v28 = vld [vmem:[%s1 + $0x28] sm:$0xff]
    %v29 = vld [vmem:[%s1 + $0x30] sm:$0xff]
    %v30 = vld [vmem:[%s1 + $0x38] sm:$0xff]
    %v31 = vld [vmem:[%s1 + $0x40] sm:$0xff]
    %v32 = vld [vmem:[%s1 + $0x48] sm:$0xff]
    %v33 = vld [vmem:[%s1 + $0x50] sm:$0xff]
    %v34 = vld [vmem:[%s1 + $0x58] sm:$0xff]
    %v35 = vld [vmem:[%s1 + $0x60] sm:$0xff]
    %v36 = vld [vmem:[%s1 + $0x68] sm:$0xff]
    %v37 = vld [vmem:[%s1 + $0x70] sm:$0xff]
    %v38 = vld [vmem:[%s1 + $0x78] sm:$0xff]
    %v39 = vld [vmem:[%s1 + $0x80] sm:$0xff]
    %v40 = vld [vmem:[%s1 + $0x88] sm:$0xff]
    %v41 = vld [vmem:[%s1 + $0x90] sm:$0xff]
    %v42 = vld [vmem:[%s1 + $0x98] sm:$0xff]
    %v43 = vld [vmem:[%s1 + $0xa0] sm:$0xff]
    %v44 = vld [vmem:[%s1 + $0xa8] sm:$0xff]
    %v45 = vld [vmem:[%s1 + $0xb0] sm:$0xff]
    %v46 = vld [vmem:[%s1 + $0xb8] sm:$0xff]
    %v47 = vld [vmem:[%s1 + $0xc0] sm:$0xff]
    %v48 = vld [vmem:[%s1 + $0xc8] sm:$0xff]
    %v49 = vld [vmem:[%s1 + $0xd0] sm:$0xff]
    %v50 = vld [vmem:[%s1 + $0xd8] sm:$0xff]
    %v51 = vld [vmem:[%s1 + $0xe0] sm:$0xff]
    %v52 = vld [vmem:[%s1 + $0xe8] sm:$0xff]
    %v53 = vld [vmem:[%s1 + $0xf0] sm:$0xff]
    %v54 = vld [vmem:[%s1 + $0xf8] sm:$0xff]
    %v55 = vld [vmem:[%s2] sm:$0x1]
    %v57 = vperm.slane %v55, 0
    %59 = vmatpush.msra.mxu0 %v38
    %60 = vmatpush.msra.mxu0 %v37
    %61 = vmatpush.msra.mxu0 %v36
    %62 = vmatpush.msra.mxu0 %v35
    %63 = vmatpush.msra.mxu0 %v34
    %64 = vmatpush.msra.mxu0 %v33
    %65 = vmatpush.msra.mxu0 %v32
    %66 = vmatpush.msra.mxu0 %v31
    %67 = vmatpush.msra.mxu0 %v30
    %68 = vmatpush.msra.mxu0 %v29
    %69 = vmatpush.msra.mxu0 %v28
    %70 = vmatpush.msra.mxu0 %v27
    %71 = vmatpush.msra.mxu0 %v26
    %72 = vmatpush.msra.mxu0 %v25
    %73 = vmatpush.msra.mxu0 %v24
    %74 = vmatpush.msra.mxu0 %v23
    %75 = vmatmul.f32.gmra.mxu0 %v15
    %v76 = vpop.f32.mrf.mxu0
    %v77 = vadd.f32 %v57, %v76
    %78 = vmatmul.f32.gmra.mxu0 %v17
    %v79 = vpop.f32.mrf.mxu0
    %v80 = vadd.f32 %v57, %v79
    %81 = vmatmul.f32.gmra.mxu0 %v19
    %v82 = vpop.f32.mrf.mxu0
    %v83 = vadd.f32 %v57, %v82
    %84 = vmatmul.f32.gmra.mxu0 %v21
    %v85 = vpop.f32.mrf.mxu0
    %v86 = vadd.f32 %v57, %v85
    %87 = vdwg.mxu0
    %88 = vmatpush.msra.mxu0 %v54
    %89 = vmatpush.msra.mxu0 %v53
    %90 = vmatpush.msra.mxu0 %v52
    %91 = vmatpush.msra.mxu0 %v51
    %92 = vmatpush.msra.mxu0 %v50
    %93 = vmatpush.msra.mxu0 %v49
    %94 = vmatpush.msra.mxu0 %v48
    %95 = vmatpush.msra.mxu0 %v47
    %96 = vmatpush.msra.mxu0 %v46
    %97 = vmatpush.msra.mxu0 %v45
    %98 = vmatpush.msra.mxu0 %v44
    %99 = vmatpush.msra.mxu0 %v43
    %100 = vmatpush.msra.mxu0 %v42
    %101 = vmatpush.msra.mxu0 %v41
    %102 = vmatpush.msra.mxu0 %v40
    %103 = vmatpush.msra.mxu0 %v39
    %104 = vmatmul.f32.gmra.mxu0 %v16
    %v105 = vpop.f32.mrf.mxu0
    %v106 = vadd.f32 %v77, %v105
    %107 = vmatmul.f32.gmra.mxu0 %v18
    %v108 = vpop.f32.mrf.mxu0
    %v109 = vadd.f32 %v80, %v108
    %110 = vmatmul.f32.gmra.mxu0 %v20
    %v111 = vpop.f32.mrf.mxu0
    %v112 = vadd.f32 %v83, %v111
    %113 = vmatmul.f32.gmra.mxu0 %v22
    %v114 = vpop.f32.mrf.mxu0
    %v115 = vadd.f32 %v86, %v114
    %116 = vdwg.mxu0
    %vm117 = vcmask 261120
    %118 = vst.msk [vmem:[#allocation2] sm:$0xff] %vm117, %v106
    %119 = vst.msk [vmem:[#allocation2 + $0x8] sm:$0xff] %vm117, %v109
    %120 = vst.msk [vmem:[#allocation2 + $0x10] sm:$0xff] %vm117, %v112
    %121 = vst.msk [vmem:[#allocation2 + $0x18] sm:$0xff] %vm117, %v115
    // Predicated region
    $region14: #{tpu_custom_call.1} parent=1 // pred_check
      _
    $region15: #{tpu_custom_call.1} parent=1 // pred_check_branch
      %123 = sbr.rel (0) target = $region17
    $region16: #{tpu_custom_call.1} parent=1 // pred_region
      %125 = vsyncadd [#allocation3], 0
      %s126 = sshll.u32 [#allocation2], 4
      %s127 = int_to_ptr.vmem [resolvable:$true] %s126
      %s128 = sshll.u32 %s3, 4
      %s129 = int_to_ptr.hbm [resolvable:$true] %s128
      %134 = dma.vmem_to_hbm [thread:$0]  %s127, 512, %s129, [#allocation3], 128, 128, 8
    $region17: #{tpu_custom_call.1} parent=1 // pred_fallthru
      _
    // Predicated region
    $region18: #{tpu_custom_call.1} parent=1 // pred_check
      _
    $region19: #{tpu_custom_call.1} parent=1 // pred_check_branch
      %136 = sbr.rel (0) target = $region21
    $region20: #{tpu_custom_call.1} parent=1 // pred_region
      %138 = dma.done [#allocation3], 512
    $region21: #{tpu_custom_call.1} parent=1 // pred_fallthru
      _
    %139 = vsyncpa [#allocation3], 1

</llo_original>
